<compile_context>
chip_gen: v7x
topology: tpu7x:2x2x1
jax: 0.10.0
libtpu: 0.0.40
codegen_flags: <defaults>
</compile_context>

<pallas_src>
import functools

import jax
import jax.numpy as jnp
from jax.experimental import pallas as pl
from jax.experimental.pallas import tpu as pltpu

_LANES = 128


def _gp_sumsq_kernel(g_ref, acc_ref):
    """Accumulate per-sample, per-lane partial sums of squares.

    g_ref:   (B, TR, 128) tile of the flattened gradient (native dtype).
    acc_ref: (1, B, 128) f32 output block, resident across the reduction axis.
    """
    @pl.when(pl.program_id(1) == 0)
    def _():
        acc_ref[...] = jnp.zeros_like(acc_ref)

    g = g_ref[...].astype(jnp.float32)                    # upcast in-register
    acc_ref[...] += jnp.sum(g * g, axis=1)[None, :, :]    # (1, B, 128)


def _gp_finalize_kernel(part_ref, out_ref, *, batch):
    """Combine per-core partials -> scalar loss = mean((||g||_2 - 1)^2)."""
    part = part_ref[...]                                       # (NC, B, 128) f32
    ss = jnp.sum(jnp.sum(part, axis=0), axis=1, keepdims=True)  # (B, 1)
    norm = jnp.sqrt(ss)                                        # per-sample L2 norm
    pen = (norm - 1.0) ** 2                                    # (B, 1)
    out_ref[...] = jnp.sum(pen, axis=0, keepdims=True) * (1.0 / batch)  # (1, 1)


def _choose_tile_rows(batch, itemsize, total_rows, budget_bytes=8 * 1024 * 1024):
    """Rows-of-128-lanes per tile so the double-buffered input tiles stay well
    inside the scoped-VMEM default of every generation (16 MiB on v5e,
    32 MiB on v6e/v7x, 64 MiB physical on v7x)."""
    bytes_per_row = batch * _LANES * itemsize
    max_tr = max(8, budget_bytes // (2 * bytes_per_row))
    tr = min(int(max_tr), max(8, int(total_rows)))
    return max(8, (tr // 8) * 8)


def gradient_penalty_from_grad(grad_interp):
    """grad_interp: (B, ...) -> scalar loss; all reductions done in Pallas."""
    B = grad_interp.shape[0]
    g = grad_interp.reshape(B, -1)        # keep native dtype: stream it as-is
    D = g.shape[1]
    itemsize = jnp.dtype(g.dtype).itemsize

    # Sublane-dense layout: (B, D) -> (B, R, 128); each streamed vreg is full.
    rows = pl.cdiv(D, _LANES)
    tile_rows = _choose_tile_rows(B, itemsize, rows)
    num_tiles = pl.cdiv(rows, tile_rows)

    # Split the reduction stream across TensorCores (2 TCs on v7x; a harmless
    # sequential partition on single-TC v5e/v6e).
    num_cores = 2 if num_tiles >= 2 else 1
    tiles_per_core = pl.cdiv(num_tiles, num_cores)
    rows_pad = num_cores * tiles_per_core * tile_rows
    d_pad = rows_pad * _LANES
    if d_pad != D:
        # Zero padding is exact for a sum of squares.
        g = jnp.pad(g, ((0, 0), (0, d_pad - D)))
    g3 = g.reshape(B, rows_pad, _LANES)   # row-major contiguous: free reshape

    tile_bytes = B * tile_rows * _LANES * itemsize
    vmem_limit = int(min(32 * 1024 * 1024,
                         max(16 * 1024 * 1024, 2 * tile_bytes + 8 * 1024 * 1024)))

    partials = pl.pallas_call(
        _gp_sumsq_kernel,
        out_shape=jax.ShapeDtypeStruct((num_cores, B, _LANES), jnp.float32),
        grid=(num_cores, tiles_per_core),
        in_specs=[pl.BlockSpec(
            (B, tile_rows, _LANES),
            lambda c, t: (0, c * tiles_per_core + t, 0))],
        out_specs=pl.BlockSpec((1, B, _LANES), lambda c, t: (c, 0, 0)),
        compiler_params=pltpu.CompilerParams(
            dimension_semantics=("parallel", "arbitrary"),
            vmem_limit_bytes=vmem_limit),
    )(g3)

    # Tiny epilogue kernel: combine per-core partials -> scalar loss.
    loss = pl.pallas_call(
        functools.partial(_gp_finalize_kernel, batch=B),
        out_shape=jax.ShapeDtypeStruct((1, 1), jnp.float32),
        grid=(1,),
        in_specs=[pl.BlockSpec((num_cores, B, _LANES), lambda i: (0, 0, 0))],
        out_specs=pl.BlockSpec((1, 1), lambda i: (0, 0)),
    )(partials)
    return loss[0, 0]


def gradient_penalty_loss(critic_fn, interp):
    """Mirrors GradientPenaltyLoss.forward(interp, interp_crit) where
    interp_crit = critic_fn(interp)."""
    # TODO(synk): torch.autograd.grad has no Pallas equivalent; done via jax.vjp.
    interp_crit, vjp_fn = jax.vjp(critic_fn, interp)
    grad_outputs = jnp.ones_like(interp_crit)          # get_grad_outputs(interp_crit)
    (grad_interp,) = vjp_fn(grad_outputs)
    return gradient_penalty_from_grad(grad_interp)


def make_critic(key, in_channels):
    """Small deterministic synthetic critic (stands in for the discriminator
    whose graph PyTorch would differentiate through)."""
    k1, k2 = jax.random.split(key)
    out_ch = 8
    w = jax.random.normal(k1, (out_ch, in_channels, 3, 3), jnp.float32) * 0.1  # OIHW
    b = jax.random.normal(k2, (out_ch,), jnp.float32) * 0.1

    def critic(x):  # x: (B, C, H, W) NCHW
        y = jax.lax.conv_general_dilated(
            x, w, window_strides=(1, 1), padding="SAME",
            dimension_numbers=("NCHW", "OIHW", "NCHW"))
        y = jnp.tanh(y + b[None, :, None, None])
        return jnp.mean(y, axis=(1, 2, 3))  # per-sample critic score, (B,)

    return critic


if __name__ == "__main__":
    key = jax.random.PRNGKey(0)
    k_x, k_crit = jax.random.split(key)

    B, C, H, W = 2, 4, 16, 16
    interp = jax.random.normal(k_x, (B, C, H, W), jnp.float32)

    critic = make_critic(k_crit, C)

    loss = gradient_penalty_loss(critic, interp)
    loss = jax.block_until_ready(loss)

    # Plain-JAX reference for the in-kernel reductions.
    _, vjp_fn = jax.vjp(critic, interp)
    (g_ref,) = vjp_fn(jnp.ones((B,), jnp.float32))
    norms = jnp.linalg.norm(g_ref.reshape(B, -1), axis=1)
    ref = jnp.mean((norms - 1.0) ** 2)

    assert jnp.allclose(loss, ref, rtol=1e-5, atol=1e-6), (loss, ref)
    print("KERNEL_OK")
</pallas_src>

<mosaic_0001>
module attributes {stable_mosaic.version = 11 : i64} {
  func.func @_gp_sumsq_kernel(%arg0: i32, %arg1: i32, %arg2: memref<2x8x128xf32, #tpu.memory_space<vmem>>, %arg3: memref<1x2x128xf32, #tpu.memory_space<vmem>>) attributes {dimension_semantics = [#tpu.dimension_semantics<parallel>, #tpu.dimension_semantics<arbitrary>], iteration_bounds = array<i64: 1, 1>, scalar_prefetch = 0 : i64, scratch_operands = 0 : i64, tpu.core_type = #tpu.core_type<tc>, window_params = [{transform_indices = @transform_0, window_bounds = array<i64: 2, 8, 128>}, {transform_indices = @transform_1, window_bounds = array<i64: 1, 2, 128>}]} {
    %c0_i32 = arith.constant 0 : i32
    %0 = arith.cmpi eq, %arg1, %c0_i32 : i32
    %1 = arith.extui %0 : i1 to i32
    %c0_i32_0 = arith.constant 0 : i32
    %2 = arith.cmpi ne, %1, %c0_i32_0 : i32
    scf.if %2 {
      %cst_9 = arith.constant 0.000000e+00 : f32
      %10 = vector.broadcast %cst_9 : f32 to vector<1x2x128xf32>
      %c0_10 = arith.constant 0 : index
      %c0_11 = arith.constant 0 : index
      %c0_12 = arith.constant 0 : index
      %11 = vector.load %arg3[%c0_10, %c0_11, %c0_12] : memref<1x2x128xf32, #tpu.memory_space<vmem>>, vector<1x2x128xf32>
      tpu.vector_store %arg3[%c0_10, %c0_11, %c0_12], %10 {strides = array<i32>} : memref<1x2x128xf32, #tpu.memory_space<vmem>>, vector<1x2x128xf32>,
    } else {
    }
    %c0 = arith.constant 0 : index
    %c0_1 = arith.constant 0 : index
    %c0_2 = arith.constant 0 : index
    %3 = vector.load %arg2[%c0, %c0_1, %c0_2] : memref<2x8x128xf32, #tpu.memory_space<vmem>>, vector<2x8x128xf32>
    %c0_3 = arith.constant 0 : index
    %c0_4 = arith.constant 0 : index
    %c0_5 = arith.constant 0 : index
    %4 = vector.load %arg3[%c0_3, %c0_4, %c0_5] : memref<1x2x128xf32, #tpu.memory_space<vmem>>, vector<1x2x128xf32>
    %5 = arith.mulf %3, %3 : vector<2x8x128xf32>
    %cst = arith.constant dense<0.000000e+00> : vector<2x128xf32>
    %6 = vector.multi_reduction <add>, %5, %cst [1] : vector<2x8x128xf32> to vector<2x128xf32>
    %7 = vector.shape_cast %6 : vector<2x128xf32> to vector<1x2x128xf32>
    %8 = arith.addf %4, %7 : vector<1x2x128xf32>
    %c0_6 = arith.constant 0 : index
    %c0_7 = arith.constant 0 : index
    %c0_8 = arith.constant 0 : index
    %9 = vector.load %arg3[%c0_6, %c0_7, %c0_8] : memref<1x2x128xf32, #tpu.memory_space<vmem>>, vector<1x2x128xf32>
    tpu.vector_store %arg3[%c0_6, %c0_7, %c0_8], %8 {strides = array<i32>} : memref<1x2x128xf32, #tpu.memory_space<vmem>>, vector<1x2x128xf32>,
    return
  }
  func.func @transform_0(%arg0: i32, %arg1: i32) -> (i32, i32, i32) {
    %c1_i32 = arith.constant 1 : i32
    %0 = arith.muli %arg0, %c1_i32 : i32
    %1 = arith.addi %0, %arg1 : i32
    %c0_i32 = arith.constant 0 : i32
    %c0_i32_0 = arith.constant 0 : i32
    %c0_i32_1 = arith.constant 0 : i32
    return %c0_i32, %1, %c0_i32_0 : i32, i32, i32
  }
  func.func @transform_1(%arg0: i32, %arg1: i32) -> (i32, i32, i32) {
    %c0_i32 = arith.constant 0 : i32
    %c0_i32_0 = arith.constant 0 : i32
    %c0_i32_1 = arith.constant 0 : i32
    return %arg0, %c0_i32, %c0_i32_0 : i32, i32, i32
  }
}

</mosaic_0001>

<llo_original>
// kernel: tpu_custom_call.1
$region0: #{tpu_custom_call.1}
  #allocation0 [shape = 'u32[]', space=smem, size = 0x4, offset = 0x4, fixed_abs, tag = 'smem constant byte address 0x4 - core index']
  #allocation1 [shape = 'u32[144,128]{1,0:T(1,128)}', space=vmem, size = 0x12000, scoped, tag = 'internal scratch']
  %s0 = inlined_call_operand.hbm [shape: f32[2,8,128], index: 0, kind: input, shape index: {}]
  %s1 = inlined_call_operand.hbm [shape: f32[1,2,128], index: 1, kind: output, shape index: {}]
  %s2 = sld [smem:[#allocation0]]
  $region22: #{tpu_custom_call.1} parent=0
    _
  %s4 = ssub.s32 1, %s2
  %s5 = scalar_select 0, %s4, %s2
  $region1: #{tpu_custom_call.1} parent=0
    #allocation2 [shape = 'u8[8192]{0}', space=vmem, size = 0x2000, scoped, tag = 'input window, operand 0, single buffered']
    #allocation3 [shape = 's32[1]{0}', space=sflag, size = 0x4, scoped, tag = 'scoped memory for tpu_custom_call.1']
    #allocation4 [shape = 's32[1]{0}', space=sflag, size = 0x4, scoped, tag = 'scoped memory for tpu_custom_call.1']
    #allocation5 [shape = 'u8[1024]{0}', space=vmem, size = 0x400, scoped, tag = 'output window, operand 0, single buffered']
    %6 = vsyncpa [#allocation3], 0
    %7 = vsyncpa [#allocation4], 0
    // Predicated region
    $region2: #{tpu_custom_call.1} parent=1 // pred_check
      _
    $region3: #{tpu_custom_call.1} parent=1 // pred_check_branch
      %9 = sbr.rel (0) target = $region5
    $region4: #{tpu_custom_call.1} parent=1 // pred_region
      %s10 = sadd.s32 0, 0
      %s12 = ssub.s32 256, 256
      %13 = vsyncadd [#allocation3], %s12
      %s14 = smul.addr %s10, 128
      %s15 = scalar_lea.hbm %s0, %s14
      %s16 = sshll.u32 [#allocation2], 4
      %s17 = int_to_ptr.vmem [resolvable:$true] %s16
      %22 = dma.hbm_to_vmem [thread:$0]  %s15, 256, %s17, [#allocation3], 128, 128, 8
    $region5: #{tpu_custom_call.1} parent=1 // pred_fallthru
      _
    // Predicated region
    $region6: #{tpu_custom_call.1} parent=1 // pred_check
      _
    $region7: #{tpu_custom_call.1} parent=1 // pred_check_branch
      %24 = sbr.rel (0) target = $region9
    $region8: #{tpu_custom_call.1} parent=1 // pred_region
      %25 = dma.done [#allocation3], 256
    $region9: #{tpu_custom_call.1} parent=1 // pred_fallthru
      _
    %s26 = sadd.s32 0, 0
    %p27 = scmp.eq.s32.totalorder 0, 0
    // Predicated region
    $region10: #{tpu_custom_call.1} parent=1 // pred_check
      %p28 = pneg %p27
    $region11: #{tpu_custom_call.1} parent=1 // pred_check_branch
      %30 = sbr.rel (%p28) target = $region13
    $region12: #{tpu_custom_call.1} parent=1 // pred_region
      %31 = vst [vmem:[#allocation5] sm:$0x3] 0.0
    $region13: #{tpu_custom_call.1} parent=1 // pred_fallthru
      _
    %v32 = vld [vmem:[#allocation2] sm:$0xff]
    %v33 = vld [vmem:[#allocation2 + $0x8] sm:$0xff]
    %v34 = vld [vmem:[#allocation5] sm:$0x3]
    %v35 = vmul.f32 %v32, %v32
    %v36 = vmul.f32 %v33, %v33
    %v37 = vrot.slane %v35, 4
    %v38 = vadd.f32 %v35, %v37
    %v39 = vrot.slane %v38, 2
    %v40 = vadd.f32 %v38, %v39
    %v41 = vrot.slane %v40, 1
    %v42 = vadd.f32 %v40, %v41
    %v43 = vrot.slane %v36, 4
    %v44 = vadd.f32 %v36, %v43
    %v45 = vrot.slane %v44, 2
    %v46 = vadd.f32 %v44, %v45
    %v47 = vrot.slane %v46, 1
    %v48 = vadd.f32 %v46, %v47
    %vm51 = vcmask 1041409
    %v52 = vsel %vm51, %v48, %v42
    %v54 = vadd.f32 %v34, %v52
    %55 = vst [vmem:[#allocation5] sm:$0x3] %v54
    // Predicated region
    $region14: #{tpu_custom_call.1} parent=1 // pred_check
      _
    $region15: #{tpu_custom_call.1} parent=1 // pred_check_branch
      %57 = sbr.rel (0) target = $region17
    $region16: #{tpu_custom_call.1} parent=1 // pred_region
      %s59 = ssub.s32 32, 32
      %60 = vsyncadd [#allocation4], %s59
      %s62 = sshll.u32 [#allocation5], 4
      %s63 = int_to_ptr.vmem [resolvable:$true] %s62
      %65 = dma.vmem_to_hbm [thread:$0]  %s63, 32, %s1, [#allocation4]
    $region17: #{tpu_custom_call.1} parent=1 // pred_fallthru
      _
    // Predicated region
    $region18: #{tpu_custom_call.1} parent=1 // pred_check
      _
    $region19: #{tpu_custom_call.1} parent=1 // pred_check_branch
      %67 = sbr.rel (0) target = $region21
    $region20: #{tpu_custom_call.1} parent=1 // pred_region
      %68 = dma.done [#allocation4], 32
    $region21: #{tpu_custom_call.1} parent=1 // pred_fallthru
      _
    %69 = vsyncpa [#allocation3], 1
    %70 = vsyncpa [#allocation4], 1

</llo_original>
